<compile_context>
chip_gen: v5e
topology: v5e:2x2
jax: 0.10.0
libtpu: 0.0.40
codegen_flags: <defaults>
</compile_context>

<pallas_src>
import numpy as np
import jax
import jax.numpy as jnp
from jax import lax
from jax.experimental import pallas as pl
from jax.experimental.pallas import tpu as pltpu

# ----------------------------- "cfg" constants -----------------------------
MAX_PEOPLE = 8
MIN_SCORE = 0.3
SPACE_SIZE = (8000.0, 8000.0, 2000.0)      # mm
SPACE_CENTER = (0.0, 0.0, 1000.0)          # mm
VOXELS_PER_AXIS = (80, 80, 20)

SCALE = tuple(s / (v - 1) for s, v in zip(SPACE_SIZE, VOXELS_PER_AXIS))
BIAS = tuple(c - s / 2.0 for c, s in zip(SPACE_CENTER, SPACE_SIZE))
DIST_THRESH = 500.0
BBOX_THRESH = 0.1
_BIG = 1e30          # "masked" squared distance (>> DIST_THRESH**2)


def _voxel_to_world(idx_f32):
    """centers = idx * scale + bias with the 3-lane scale/bias built from a
    lane iota + Python-float selects (no captured jnp-array constants)."""
    lane = lax.broadcasted_iota(jnp.int32, idx_f32.shape, 2)
    scale = jnp.where(lane == 0, SCALE[0],
                      jnp.where(lane == 1, SCALE[1], SCALE[2])).astype(jnp.float32)
    bias = jnp.where(lane == 0, BIAS[0],
                     jnp.where(lane == 1, BIAS[1], BIAS[2])).astype(jnp.float32)
    return idx_f32 * scale + bias


# --------------------------------- kernels ---------------------------------
def _train_kernel(idx_ref, conf_ref, bbox_ref, gt3d_ref, gtbb_ref, nper_ref,
                  out_ref):
    # idx_ref:  (B, P, 3) i32  voxel indices
    # conf_ref: (B, P, 1) f32  confidences
    # bbox_ref: (B, P, 2) f32  predicted bbox sizes
    # gt3d_ref: (B, P, 3) f32  gt 3D centers (first num_person[b] rows valid)
    # gtbb_ref: (B, P, 2) f32  gt bbox sizes
    # nper_ref: (B,)      i32  in SMEM
    # out_ref:  (B, P, 7) f32
    B, P, _ = idx_ref.shape

    centers = _voxel_to_world(idx_ref[...].astype(jnp.float32))       # (B,P,3)
    gt3d = gt3d_ref[...]                                               # (B,P,3)
    gt_bbox = gtbb_ref[...]                                            # (B,P,2)
    bbox = bbox_ref[...]                                               # (B,P,2)
    conf = conf_ref[...]                                               # (B,P,1)

    # Pairwise squared distances: direct broadcast difference (pure VPU,
    # no MXU/relayout; the (B,P,P,3) intermediate is only a few hundred f32).
    diff = centers[:, :, None, :] - gt3d[:, None, :, :]                # (B,P,P,3)
    d2 = jnp.sum(diff * diff, axis=-1)                                 # (B,P,P)

    # Mask gt columns j >= num_person[b] using SMEM scalar reads.
    col = lax.broadcasted_iota(jnp.int32, (B, P, P), 2)
    bidx = lax.broadcasted_iota(jnp.int32, (B, P, P), 0)
    npb = jnp.zeros((B, P, P), jnp.int32)
    for i in range(B):                                  # B is small & static
        npb = jnp.where(bidx == i, nper_ref[i], npb)
    d2 = jnp.where(col < npb, d2, _BIG)

    min_d2 = jnp.min(d2, axis=-1, keepdims=True)                       # (B,P,1)
    # First argmin (matches torch.min tie-break).  If no gt is valid,
    # min_d2 == _BIG so `matched` is False and the gathered row is unused.
    min_gt = jnp.min(jnp.where(d2 <= min_d2, col, P),
                     axis=-1, keepdims=True)                           # (B,P,1)
    matched = min_d2 <= DIST_THRESH * DIST_THRESH                      # (B,P,1)
    proposal2gt = jnp.where(matched, min_gt.astype(jnp.float32), -1.0)

    # Gather gt_bbox[min_gt] via broadcast select + sublane sum (no MXU).
    sel = col[..., None] == min_gt[..., None]                          # (B,P,P,1)
    gt_sel = jnp.sum(jnp.where(sel, gt_bbox[:, None, :, :], 0.0),
                     axis=2)                                           # (B,P,2)

    # bbox fix-up: boolean compares on the two channels (no cast / reduction).
    low_w = bbox[:, :, 0:1] < gt_sel[:, :, 0:1] - BBOX_THRESH
    low_h = bbox[:, :, 1:2] < gt_sel[:, :, 1:2] - BBOX_THRESH
    need_fix = matched & (low_w | low_h)
    new_bbox = jnp.where(need_fix, gt_sel, bbox)

    # Assemble the 7 channels in registers; ONE dense store.
    out_ref[...] = jnp.concatenate([centers, proposal2gt, conf, new_bbox],
                                   axis=-1)


def _eval_kernel(idx_ref, conf_ref, bbox_ref, out_ref):
    # Fully-kernelized eval variant (default eval path is plain jnp, below).
    centers = _voxel_to_world(idx_ref[...].astype(jnp.float32))        # (B,P,3)
    conf = conf_ref[...]                                               # (B,P,1)
    flag = (conf > MIN_SCORE).astype(jnp.float32) - 1.0
    out_ref[...] = jnp.concatenate([centers, flag, conf, bbox_ref[...]],
                                   axis=-1)


# -------------------------------- wrappers ---------------------------------
_VMEM = pltpu.MemorySpace.VMEM
_SMEM = pltpu.MemorySpace.SMEM


def proposal_layer_train(topk_index, topk_confs, match_bbox_preds,
                         gt_3d, gt_bbox, num_person):
    B, P, _ = topk_index.shape
    idx = topk_index.astype(jnp.int32)
    conf = topk_confs.astype(jnp.float32).reshape(B, P, 1)   # free reshape
    bbox = match_bbox_preds.astype(jnp.float32)
    gt3d = gt_3d.astype(jnp.float32)
    gtbb = gt_bbox.astype(jnp.float32)
    nper = num_person.astype(jnp.int32).reshape(B)           # 1-D -> SMEM

    # Single invocation (no grid): all operands are a few KiB and live in
    # VMEM for the whole kernel; num_person sits in SMEM as scalars.
    # TODO(synk): if B grows, grid over B (blocks (b_tile,P,C)) with
    # dimension_semantics=("parallel",) to shard across v7x's two TCs, and
    # repack to channels-major (C, B*P) once B*P >= 128 for lane-dense stores.
    return pl.pallas_call(
        _train_kernel,
        out_shape=jax.ShapeDtypeStruct((B, P, 7), jnp.float32),
        in_specs=[pl.BlockSpec(memory_space=_VMEM),   # idx
                  pl.BlockSpec(memory_space=_VMEM),   # conf
                  pl.BlockSpec(memory_space=_VMEM),   # bbox preds
                  pl.BlockSpec(memory_space=_VMEM),   # gt 3d
                  pl.BlockSpec(memory_space=_VMEM),   # gt bbox
                  pl.BlockSpec(memory_space=_SMEM)],  # num_person
        out_specs=pl.BlockSpec(memory_space=_VMEM),
    )(idx, conf, bbox, gt3d, gtbb, nper)


def proposal_layer_eval(topk_index, topk_confs, match_bbox_preds):
    # Per perf review: eval math is far below pallas_call fixed cost, so it is
    # expressed as plain jnp and left to XLA to fuse into the top-k producer.
    scale = jnp.asarray(SCALE, jnp.float32)
    bias = jnp.asarray(BIAS, jnp.float32)
    centers = topk_index.astype(jnp.float32) * scale + bias
    conf = topk_confs.astype(jnp.float32)[..., None]
    flag = (conf > MIN_SCORE).astype(jnp.float32) - 1.0
    return jnp.concatenate(
        [centers, flag, conf, match_bbox_preds.astype(jnp.float32)], axis=-1)


def proposal_layer_eval_pallas(topk_index, topk_confs, match_bbox_preds):
    # Kept for a fully-kernelized layer; same structure as the train wrapper.
    B, P, _ = topk_index.shape
    idx = topk_index.astype(jnp.int32)
    conf = topk_confs.astype(jnp.float32).reshape(B, P, 1)
    bbox = match_bbox_preds.astype(jnp.float32)
    return pl.pallas_call(
        _eval_kernel,
        out_shape=jax.ShapeDtypeStruct((B, P, 7), jnp.float32),
        in_specs=[pl.BlockSpec(memory_space=_VMEM)] * 3,
        out_specs=pl.BlockSpec(memory_space=_VMEM),
    )(idx, conf, bbox)


def proposal_layer_forward(topk_index, topk_confs, match_bbox_preds,
                           meta=None, training=False):
    """Dispatch exactly like ProposalLayer.forward."""
    if training and meta is not None and ('roots_3d' in meta
                                          and 'num_person' in meta):
        return proposal_layer_train(topk_index, topk_confs, match_bbox_preds,
                                    meta['roots_3d'], meta['bbox'],
                                    meta['num_person'])
    return proposal_layer_eval(topk_index, topk_confs, match_bbox_preds)


# -------------------------- pure-numpy references ---------------------------
def _ref_eval(idx, conf, bbox):
    B, P, _ = idx.shape
    scale = np.asarray(SCALE, np.float32)
    bias = np.asarray(BIAS, np.float32)
    out = np.zeros((B, P, 7), np.float32)
    out[:, :, 0:3] = idx.astype(np.float32) * scale + bias
    out[:, :, 3] = (conf > MIN_SCORE).astype(np.float32) - 1.0
    out[:, :, 4] = conf
    out[:, :, 5:7] = bbox
    return out


def _ref_train(idx, conf, bbox, gt3d, gtbbox, num_person):
    B, P, _ = idx.shape
    scale = np.asarray(SCALE, np.float32)
    bias = np.asarray(BIAS, np.float32)
    centers = idx.astype(np.float32) * scale + bias
    bbox = bbox.astype(np.float32).copy()
    out = np.zeros((B, P, 7), np.float32)
    out[:, :, 0:3] = centers
    out[:, :, 4] = conf
    for i in range(B):
        n = int(num_person[i])
        gt = gt3d[i, :n].reshape(1, n, 3)
        props = centers[i].reshape(P, 1, 3)
        dist = np.sqrt(np.sum((props - gt) ** 2, axis=-1))
        min_gt = np.argmin(dist, axis=-1)
        min_dist = dist[np.arange(P), min_gt]
        p2g = min_gt.astype(np.float32)
        p2g[min_dist > DIST_THRESH] = -1.0
        for k in range(P):
            if p2g[k] < 0:
                continue
            g = int(p2g[k])
            if np.sum(bbox[i, k] < gtbbox[i, g] - BBOX_THRESH):
                bbox[i, k] = gtbbox[i, g]
        out[i, :, 3] = p2g
    out[:, :, 5:7] = bbox
    return out


# ----------------------------------- main -----------------------------------
if __name__ == "__main__":
    B, P = 2, MAX_PEOPLE
    key = jax.random.PRNGKey(0)
    k1, k2, k3, k4, k5 = jax.random.split(key, 5)

    topk_index = jax.random.randint(
        k1, (B, P, 3), 0, max(VOXELS_PER_AXIS), dtype=jnp.int32)
    topk_index = jnp.minimum(
        topk_index, jnp.asarray(VOXELS_PER_AXIS, jnp.int32) - 1)
    topk_confs = jax.random.uniform(k2, (B, P), jnp.float32)
    match_bbox_preds = jax.random.uniform(
        k3, (B, P, 2), jnp.float32, minval=0.5, maxval=2.5)

    # ground truth meta (training branch)
    gt_3d = jax.random.uniform(
        k4, (B, P, 3), jnp.float32, minval=-2000.0, maxval=2000.0)
    gt_bbox = jax.random.uniform(
        k5, (B, P, 2), jnp.float32, minval=0.5, maxval=2.5)
    num_person = jnp.array([3, 5], jnp.int32)
    meta = {'roots_3d': gt_3d, 'bbox': gt_bbox, 'num_person': num_person}

    # inference branch (default: plain-jnp fused path)
    out_eval = proposal_layer_forward(topk_index, topk_confs,
                                      match_bbox_preds, meta=None,
                                      training=False)
    out_eval = jax.block_until_ready(out_eval)

    # inference branch (fully-kernelized Pallas variant)
    out_eval_pl = proposal_layer_eval_pallas(topk_index, topk_confs,
                                             match_bbox_preds)
    out_eval_pl = jax.block_until_ready(out_eval_pl)

    # training branch (filter_proposal fused in the Pallas kernel)
    out_train = proposal_layer_forward(topk_index, topk_confs,
                                       match_bbox_preds, meta=meta,
                                       training=True)
    out_train = jax.block_until_ready(out_train)

    ref_e = _ref_eval(np.asarray(topk_index), np.asarray(topk_confs),
                      np.asarray(match_bbox_preds))
    ref_t = _ref_train(np.asarray(topk_index), np.asarray(topk_confs),
                       np.asarray(match_bbox_preds), np.asarray(gt_3d),
                       np.asarray(gt_bbox), np.asarray(num_person))

    np.testing.assert_allclose(np.asarray(out_eval), ref_e,
                               rtol=1e-5, atol=1e-3)
    np.testing.assert_allclose(np.asarray(out_eval_pl), ref_e,
                               rtol=1e-5, atol=1e-3)
    np.testing.assert_allclose(np.asarray(out_train), ref_t,
                               rtol=1e-5, atol=1e-3)
    print("KERNEL_OK")
</pallas_src>

<mosaic_0001>
module attributes {stable_mosaic.version = 11 : i64} {
  func.func @_eval_kernel(%arg0: memref<2x8x3xi32, #tpu.memory_space<vmem>>, %arg1: memref<2x8x1xf32, #tpu.memory_space<vmem>>, %arg2: memref<2x8x2xf32, #tpu.memory_space<vmem>>, %arg3: memref<2x8x7xf32, #tpu.memory_space<vmem>>) attributes {dimension_semantics = [], scalar_prefetch = 0 : i64, scratch_operands = 0 : i64, tpu.core_type = #tpu.core_type<tc>} {
    %c0 = arith.constant 0 : index
    %c0_0 = arith.constant 0 : index
    %c0_1 = arith.constant 0 : index
    %0 = vector.load %arg0[%c0, %c0_0, %c0_1] : memref<2x8x3xi32, #tpu.memory_space<vmem>>, vector<2x8x3xi32>
    %1 = arith.sitofp %0 : vector<2x8x3xi32> to vector<2x8x3xf32>
    %2 = tpu.iota {dimensions = array<i32: 2>} : vector<2x8x3xi32>
    %c0_i32 = arith.constant 0 : i32
    %3 = vector.broadcast %c0_i32 : i32 to vector<2x8x3xi32>
    %4 = arith.cmpi eq, %2, %3 : vector<2x8x3xi32>
    %c1_i32 = arith.constant 1 : i32
    %5 = vector.broadcast %c1_i32 : i32 to vector<2x8x3xi32>
    %6 = arith.cmpi eq, %2, %5 : vector<2x8x3xi32>
    %cst = arith.constant 101.265823 : f32
    %cst_2 = arith.constant 105.263161 : f32
    %7 = vector.broadcast %cst : f32 to vector<2x8x3xf32>
    %8 = vector.broadcast %cst_2 : f32 to vector<2x8x3xf32>
    %9 = arith.select %6, %7, %8 : vector<2x8x3xi1>, vector<2x8x3xf32>
    %cst_3 = arith.constant 101.265823 : f32
    %10 = vector.broadcast %cst_3 : f32 to vector<2x8x3xf32>
    %11 = arith.select %4, %10, %9 : vector<2x8x3xi1>, vector<2x8x3xf32>
    %c0_i32_4 = arith.constant 0 : i32
    %12 = vector.broadcast %c0_i32_4 : i32 to vector<2x8x3xi32>
    %13 = arith.cmpi eq, %2, %12 : vector<2x8x3xi32>
    %c1_i32_5 = arith.constant 1 : i32
    %14 = vector.broadcast %c1_i32_5 : i32 to vector<2x8x3xi32>
    %15 = arith.cmpi eq, %2, %14 : vector<2x8x3xi32>
    %cst_6 = arith.constant -4.000000e+03 : f32
    %cst_7 = arith.constant 0.000000e+00 : f32
    %16 = vector.broadcast %cst_6 : f32 to vector<2x8x3xf32>
    %17 = vector.broadcast %cst_7 : f32 to vector<2x8x3xf32>
    %18 = arith.select %15, %16, %17 : vector<2x8x3xi1>, vector<2x8x3xf32>
    %cst_8 = arith.constant -4.000000e+03 : f32
    %19 = vector.broadcast %cst_8 : f32 to vector<2x8x3xf32>
    %20 = arith.select %13, %19, %18 : vector<2x8x3xi1>, vector<2x8x3xf32>
    %21 = arith.mulf %1, %11 : vector<2x8x3xf32>
    %22 = arith.addf %21, %20 : vector<2x8x3xf32>
    %c0_9 = arith.constant 0 : index
    %c0_10 = arith.constant 0 : index
    %c0_11 = arith.constant 0 : index
    %23 = vector.load %arg1[%c0_9, %c0_10, %c0_11] : memref<2x8x1xf32, #tpu.memory_space<vmem>>, vector<2x8x1xf32>
    %cst_12 = arith.constant 3.000000e-01 : f32
    %24 = vector.broadcast %cst_12 : f32 to vector<2x8x1xf32>
    %25 = arith.cmpf ogt, %23, %24 : vector<2x8x1xf32>
    %26 = arith.extui %25 : vector<2x8x1xi1> to vector<2x8x1xi32>
    %27 = arith.sitofp %26 : vector<2x8x1xi32> to vector<2x8x1xf32>
    %cst_13 = arith.constant 1.000000e+00 : f32
    %28 = vector.broadcast %cst_13 : f32 to vector<2x8x1xf32>
    %29 = arith.subf %27, %28 : vector<2x8x1xf32>
    %c0_14 = arith.constant 0 : index
    %c0_15 = arith.constant 0 : index
    %c0_16 = arith.constant 0 : index
    %30 = vector.load %arg2[%c0_14, %c0_15, %c0_16] : memref<2x8x2xf32, #tpu.memory_space<vmem>>, vector<2x8x2xf32>
    %31 = tpu.concatenate %22, %29, %23, %30 in 2 : vector<2x8x3xf32>, vector<2x8x1xf32>, vector<2x8x1xf32>, vector<2x8x2xf32> -> vector<2x8x7xf32>
    %c0_17 = arith.constant 0 : index
    %c0_18 = arith.constant 0 : index
    %c0_19 = arith.constant 0 : index
    %32 = vector.load %arg3[%c0_17, %c0_18, %c0_19] : memref<2x8x7xf32, #tpu.memory_space<vmem>>, vector<2x8x7xf32>
    tpu.vector_store %arg3[%c0_17, %c0_18, %c0_19], %31 {strides = array<i32>} : memref<2x8x7xf32, #tpu.memory_space<vmem>>, vector<2x8x7xf32>,
    return
  }
}

</mosaic_0001>

<llo_original>
// kernel: tpu_custom_call.1
$region0: #{tpu_custom_call.1}
  #allocation0 [shape = 'u32[]', space=smem, size = 0x4, offset = 0x4, fixed_abs, tag = 'smem constant byte address 0x4 - core index']
  #allocation1 [shape = 'u32[72,128]{1,0:T(1,128)}', space=vmem, size = 0x9000, scoped, tag = 'internal scratch']
  %s0 = inlined_call_operand.vmem [shape: s32[2,8,3], index: 0, kind: input, shape index: {}]
  %s1 = inlined_call_operand.vmem [shape: f32[2,8,1], index: 1, kind: input, shape index: {}]
  %s2 = inlined_call_operand.vmem [shape: f32[2,8,2], index: 2, kind: input, shape index: {}]
  %s3 = inlined_call_operand.vmem [shape: f32[2,8,7], index: 3, kind: output, shape index: {}]
  %s4 = sld [smem:[#allocation0]]
  $region22: #{tpu_custom_call.1} parent=0
    _
  %s6 = ssub.s32 1, %s4
  %s7 = scalar_select 0, %s6, %s4
  // Predicated region
  $region2: #{tpu_custom_call.1} parent=0 // pred_check
    _
  $region3: #{tpu_custom_call.1} parent=0 // pred_check_branch
    %9 = sbr.rel (0) target = $region5
  $region4: #{tpu_custom_call.1} parent=0 // pred_region
    _
  $region5: #{tpu_custom_call.1} parent=0 // pred_fallthru
    _
  // Predicated region
  $region6: #{tpu_custom_call.1} parent=0 // pred_check
    _
  $region7: #{tpu_custom_call.1} parent=0 // pred_check_branch
    %11 = sbr.rel (0) target = $region9
  $region8: #{tpu_custom_call.1} parent=0 // pred_region
    _
  $region9: #{tpu_custom_call.1} parent=0 // pred_fallthru
    _
  // Predicated region
  $region10: #{tpu_custom_call.1} parent=0 // pred_check
    _
  $region11: #{tpu_custom_call.1} parent=0 // pred_check_branch
    %13 = sbr.rel (0) target = $region13
  $region12: #{tpu_custom_call.1} parent=0 // pred_region
    _
  $region13: #{tpu_custom_call.1} parent=0 // pred_fallthru
    _
  %v14 = vld [vmem:[%s0] sm:$0xff]
  %v15 = vld [vmem:[%s0 + $0x8] sm:$0xff]
  %v16 = vcvt.s32.f32 %v14
  %v17 = vcvt.s32.f32 %v15
  %v18 = vlaneseq
  %v19 = vand.u32 %v18, 127
  %vm20 = vcmp.eq.s32.totalorder %v19, 0
  %vm21 = vcmp.eq.s32.totalorder %v19, 1
  %v22 = vsel %vm21, 101.26582, 105.26316
  %v23 = vsel %vm20, 101.26582, %v22
  %v24 = vsel %vm21, -4000.0, 0.0
  %v25 = vsel %vm20, -4000.0, %v24
  %v26 = vmul.f32 %v16, %v23
  %v27 = vmul.f32 %v17, %v23
  %v28 = vadd.f32 %v26, %v25
  %v29 = vadd.f32 %v27, %v25
  %v30 = vld [vmem:[%s1] sm:$0xff]
  %v31 = vld [vmem:[%s1 + $0x8] sm:$0xff]
  %vm32 = vcmp.gt.f32.partialorder %v30, 0.3
  %vm33 = vcmp.gt.f32.partialorder %v31, 0.3
  %v34 = vsel %vm32, 1, 0
  %v35 = vsel %vm33, 1, 0
  %v36 = vcvt.s32.f32 %v34
  %v37 = vcvt.s32.f32 %v35
  %v38 = vsub.f32 %v36, 1.0
  %v39 = vsub.f32 %v37, 1.0
  %v40 = vld [vmem:[%s2] sm:$0xff]
  %v41 = vld [vmem:[%s2 + $0x8] sm:$0xff]
  %44 = vrot.lane.b32.xlu0 %v38, 3
  %v45 = vpop.permute.xlu0 %44
  %46 = vrot.lane.b32.xlu0 %v39, 3
  %v47 = vpop.permute.xlu0 %46
  %52 = vrot.lane.b32.xlu0 %v30, 4
  %v53 = vpop.permute.xlu0 %52
  %54 = vrot.lane.b32.xlu0 %v31, 4
  %v55 = vpop.permute.xlu0 %54
  %60 = vrot.lane.b32.xlu0 %v40, 5
  %v61 = vpop.permute.xlu0 %60
  %62 = vrot.lane.b32.xlu0 %v41, 5
  %v63 = vpop.permute.xlu0 %62
  %vm66 = vcmask 23552
  %v67 = vsel %vm66, %v28, %v45
  %v68 = vsel %vm66, %v29, %v47
  %vm69 = vcmask 31744
  %v70 = vsel %vm69, %v67, %v53
  %v71 = vsel %vm69, %v68, %v55
  %vm72 = vcmask 39936
  %v73 = vsel %vm72, %v70, %v61
  %v74 = vsel %vm72, %v71, %v63
  %vm75 = vcmask 56320
  %76 = vst.msk [vmem:[%s3] sm:$0xff] %vm75, %v73
  %77 = vst.msk [vmem:[%s3 + $0x8] sm:$0xff] %vm75, %v74
  // Predicated region
  $region14: #{tpu_custom_call.1} parent=0 // pred_check
    _
  $region15: #{tpu_custom_call.1} parent=0 // pred_check_branch
    %79 = sbr.rel (0) target = $region17
  $region16: #{tpu_custom_call.1} parent=0 // pred_region
    _
  $region17: #{tpu_custom_call.1} parent=0 // pred_fallthru
    _
  // Predicated region
  $region18: #{tpu_custom_call.1} parent=0 // pred_check
    _
  $region19: #{tpu_custom_call.1} parent=0 // pred_check_branch
    %81 = sbr.rel (0) target = $region21
  $region20: #{tpu_custom_call.1} parent=0 // pred_region
    _
  $region21: #{tpu_custom_call.1} parent=0 // pred_fallthru
    _

</llo_original>
